<compile_context>
chip_gen: v6e
topology: v6e:2x2x1
jax: 0.10.0
libtpu: 0.0.40
codegen_flags: <defaults>
</compile_context>

<pallas_src>
import functools

import numpy as np
import jax
import jax.numpy as jnp
from jax import lax
from jax.experimental import pallas as pl
from jax.experimental.pallas import tpu as pltpu

# module hyper-params (from gpt.py)
BLOCK_SIZE = 8                       # max sequence length (tril buffer size)
N_EMBD = 32
NUM_HEADS = 4
HEAD_SIZE = N_EMBD // NUM_HEADS      # 8

_NEG_BIG = -1e30                     # finite "-inf" (avoids exp(-inf-(-inf)) NaNs)


def _mha_kernel(x_ref, wqkv_ref, wp_ref, bp_ref, hmask_ref, amask_ref, o_ref,
                *, num_heads):
    """Whole problem in one invocation (no grid).

    x_ref     : (B*T, C)    all batches stacked along rows
    wqkv_ref  : (C, 3*C)    [Wq*scale | Wk | Wv] column blocks
    wp_ref    : (C, C)      output projection weight
    bp_ref    : (1, C)      output projection bias
    hmask_ref : (H*BT, C)   0/1 head block-diagonal mask (also the segment-sum map)
    amask_ref : (BT, H*BT)  additive causal + same-batch mask (0 / -1e30)
    o_ref     : (B*T, C)
    """
    x = x_ref[...]
    n_rows, C = x.shape                 # (B*T, C) = (16, 32)
    H = num_heads

    # ---- fused Q/K/V projection: one MXU op (scale already folded into Wq) --
    qkv = jnp.dot(x, wqkv_ref[...], preferred_element_type=jnp.float32)  # (BT, 3C)
    q = qkv[:, :C]
    k = qkv[:, C:2 * C]
    v = qkv[:, 2 * C:]

    # ---- head-packed ("block diagonal") K and V ------------------------------
    # Row r = h*BT + j of k_bd carries k_head_h[j, :] in head-h's column block
    # and zeros elsewhere, so one full-width matmul produces every head's scores.
    hm = hmask_ref[...]                                    # (H*BT, C) f32 0/1
    k_bd = jnp.tile(k, (H, 1)) * hm
    v_bd = jnp.tile(v, (H, 1)) * hm

    # ---- scores + precomputed causal/batch mask (additive) -------------------
    # NOTE: reference scales by n_embd**-0.5 (C), not head_size**-0.5 — folded
    # into Wq in the wrapper.
    s = lax.dot_general(q, k_bd, (((1,), (1,)), ((), ())),
                        preferred_element_type=jnp.float32) + amask_ref[...]   # (BT, H*BT)

    # ---- per-(row, head-segment) softmax, normalised after the PV matmul -----
    # A row-wide max is a valid stabiliser (constant within each segment);
    # masked entries underflow to exactly 0 after exp.
    m = jnp.max(s, axis=-1, keepdims=True)
    e = jnp.exp(s - m)                                     # (BT, H*BT)

    # att_unnorm[i, h*hs+d] = sum_j e[i, h*BT+j] * v_h[j, d]
    att_un = jnp.dot(e, v_bd, preferred_element_type=jnp.float32)   # (BT, C)
    # denom[i, h*hs+d]     = sum_j e[i, h*BT+j]   (head_mask doubles as ones map)
    denom = jnp.dot(e, hm, preferred_element_type=jnp.float32)      # (BT, C)
    # clamp guards against a fully-underflowed segment (0 * inf -> NaN)
    att = att_un * pl.reciprocal(jnp.maximum(denom, 1e-30), approx=True)

    # TODO(synk): nn.Dropout() is identity in eval mode; training-mode stochastic
    # dropout (p=0.5 on attention weights) is intentionally omitted.

    # ---- output projection (Linear with bias) --------------------------------
    y = jnp.dot(att, wp_ref[...], preferred_element_type=jnp.float32) + bp_ref[...]
    o_ref[...] = y.astype(o_ref.dtype)


def prepare_params(wk, wq, wv, wp, bp):
    """One-time (outside the hot path): fused weight with scale folded in, bias."""
    scale = N_EMBD ** (-0.5)
    wqkv = jnp.concatenate([wq * scale, wk, wv], axis=1)   # (C, 3C)
    bp2 = bp.reshape(1, N_EMBD)
    return wqkv, wp, bp2


def build_masks(B, T):
    """One-time (outside the hot path): data-independent masks."""
    n_rows = B * T
    hp = NUM_HEADS * n_rows

    # head block-diagonal mask (H*BT, C): 1 iff row's head == column's head block
    r = np.arange(hp)[:, None]
    c = np.arange(N_EMBD)[None, :]
    head_mask = ((r // n_rows) == (c // HEAD_SIZE)).astype(np.float32)

    # additive causal + same-batch mask (BT, H*BT): 0 where valid, -1e30 elsewhere
    qi = np.arange(n_rows)[:, None]
    kj = np.arange(hp)[None, :] % n_rows
    valid = ((qi // T) == (kj // T)) & ((qi % T) >= (kj % T))
    add_mask = np.where(valid, 0.0, _NEG_BIG).astype(np.float32)

    return jnp.asarray(head_mask), jnp.asarray(add_mask)


@jax.jit
def multi_head_attention(x, wqkv, wp, bp2, head_mask, add_mask):
    B, T, C = x.shape
    x2 = x.reshape(B * T, C)                     # free row-major reshape

    kernel = functools.partial(_mha_kernel, num_heads=NUM_HEADS)
    vmem_spec = pl.BlockSpec(memory_space=pltpu.MemorySpace.VMEM)

    out2 = pl.pallas_call(
        kernel,
        out_shape=jax.ShapeDtypeStruct((B * T, C), x.dtype),
        in_specs=[vmem_spec] * 6,
        out_specs=vmem_spec,
    )(x2, wqkv, wp, bp2, head_mask, add_mask)

    # TODO(synk): the (16, 32) output store is a 32-lane masked vst; a lane-dense
    # repack costs more than it saves at this size (kept as-is per review).
    return out2.reshape(B, T, C)


def _reference(x, wk, wq, wv, wp, bp):
    """Pure-JAX reference mirroring the PyTorch forward (eval mode)."""
    B, T, C = x.shape
    hs = HEAD_SIZE
    mask = jnp.tril(jnp.ones((T, T), dtype=bool))
    outs = []
    for h in range(NUM_HEADS):
        kh = x @ wk[:, h * hs:(h + 1) * hs]
        qh = x @ wq[:, h * hs:(h + 1) * hs]
        vh = x @ wv[:, h * hs:(h + 1) * hs]
        wei = (qh @ jnp.swapaxes(kh, -1, -2)) * (C ** -0.5)
        wei = jnp.where(mask, wei, -jnp.inf)
        wei = jax.nn.softmax(wei, axis=-1)
        outs.append(wei @ vh)
    cat = jnp.concatenate(outs, axis=-1)
    return cat @ wp + bp


if __name__ == "__main__":
    key = jax.random.PRNGKey(0)
    k_x, k_wk, k_wq, k_wv, k_wp, k_bp = jax.random.split(key, 6)

    B, T, C = 2, BLOCK_SIZE, N_EMBD            # (2, 8, 32)
    x = jax.random.normal(k_x, (B, T, C), dtype=jnp.float32)

    # deterministic synthetic parameters (stacked per-head projections)
    wk = jax.random.normal(k_wk, (C, NUM_HEADS * HEAD_SIZE), jnp.float32) * 0.1
    wq = jax.random.normal(k_wq, (C, NUM_HEADS * HEAD_SIZE), jnp.float32) * 0.1
    wv = jax.random.normal(k_wv, (C, NUM_HEADS * HEAD_SIZE), jnp.float32) * 0.1
    wp = jax.random.normal(k_wp, (C, C), jnp.float32) * 0.1
    bp = jax.random.normal(k_bp, (C,), jnp.float32) * 0.1

    # one-time prep (outside the hot path): fused/scaled weights + constant masks
    wqkv, wp_p, bp2 = prepare_params(wk, wq, wv, wp, bp)
    head_mask, add_mask = build_masks(B, T)

    out = multi_head_attention(x, wqkv, wp_p, bp2, head_mask, add_mask)
    out = jax.block_until_ready(out)

    ref = _reference(x, wk, wq, wv, wp, bp)
    assert out.shape == (B, T, C)
    # approx=True reciprocal (EUP) adds ~1e-3-level relative error to the softmax
    # normaliser, hence the slightly relaxed tolerance vs. the exact reference.
    assert jnp.allclose(out, ref, atol=2e-3, rtol=2e-3), "mismatch vs reference"

    print("KERNEL_OK")
</pallas_src>

<mosaic_0001>
module attributes {stable_mosaic.version = 11 : i64} {
  func.func @_mha_kernel(%arg0: memref<16x32xf32, #tpu.memory_space<vmem>>, %arg1: memref<32x96xf32, #tpu.memory_space<vmem>>, %arg2: memref<32x32xf32, #tpu.memory_space<vmem>>, %arg3: memref<1x32xf32, #tpu.memory_space<vmem>>, %arg4: memref<64x32xf32, #tpu.memory_space<vmem>>, %arg5: memref<16x64xf32, #tpu.memory_space<vmem>>, %arg6: memref<16x32xf32, #tpu.memory_space<vmem>>) attributes {dimension_semantics = [], scalar_prefetch = 0 : i64, scratch_operands = 0 : i64, tpu.core_type = #tpu.core_type<tc>} {
    %c0 = arith.constant 0 : index
    %c0_0 = arith.constant 0 : index
    %0 = vector.load %arg0[%c0, %c0_0] : memref<16x32xf32, #tpu.memory_space<vmem>>, vector<16x32xf32>
    %c0_1 = arith.constant 0 : index
    %c0_2 = arith.constant 0 : index
    %1 = vector.load %arg1[%c0_1, %c0_2] : memref<32x96xf32, #tpu.memory_space<vmem>>, vector<32x96xf32>
    %cst = arith.constant dense<0.000000e+00> : vector<16x96xf32>
    %2 = tpu.matmul %0, %1, %cst {dimension_numbers = #tpu.dot_dimension_numbers<[1], [0], [0], [1], [0, 0, 1, 1], [], []>} : vector<16x32xf32>, vector<32x96xf32>, vector<16x96xf32> -> vector<16x96xf32>
    %3 = vector.extract_strided_slice %2 {offsets = [0, 0], sizes = [16, 32], strides = [1, 1]} : vector<16x96xf32> to vector<16x32xf32>
    %4 = vector.extract_strided_slice %2 {offsets = [0, 32], sizes = [16, 32], strides = [1, 1]} : vector<16x96xf32> to vector<16x32xf32>
    %5 = vector.extract_strided_slice %2 {offsets = [0, 64], sizes = [16, 32], strides = [1, 1]} : vector<16x96xf32> to vector<16x32xf32>
    %c0_3 = arith.constant 0 : index
    %c0_4 = arith.constant 0 : index
    %6 = vector.load %arg4[%c0_3, %c0_4] : memref<64x32xf32, #tpu.memory_space<vmem>>, vector<64x32xf32>
    %7 = tpu.concatenate %4, %4, %4, %4 in 0 : vector<16x32xf32>, vector<16x32xf32>, vector<16x32xf32>, vector<16x32xf32> -> vector<64x32xf32>
    %8 = arith.mulf %7, %6 : vector<64x32xf32>
    %9 = tpu.concatenate %5, %5, %5, %5 in 0 : vector<16x32xf32>, vector<16x32xf32>, vector<16x32xf32>, vector<16x32xf32> -> vector<64x32xf32>
    %10 = arith.mulf %9, %6 : vector<64x32xf32>
    %cst_5 = arith.constant dense<0.000000e+00> : vector<16x64xf32>
    %11 = tpu.matmul %3, %8, %cst_5 {dimension_numbers = #tpu.dot_dimension_numbers<[1], [1], [0], [0], [0, 0, 1, 0], [], []>} : vector<16x32xf32>, vector<64x32xf32>, vector<16x64xf32> -> vector<16x64xf32>
    %c0_6 = arith.constant 0 : index
    %c0_7 = arith.constant 0 : index
    %12 = vector.load %arg5[%c0_6, %c0_7] : memref<16x64xf32, #tpu.memory_space<vmem>>, vector<16x64xf32>
    %13 = arith.addf %11, %12 : vector<16x64xf32>
    %cst_8 = arith.constant dense<0xFF800000> : vector<16xf32>
    %14 = vector.multi_reduction <maximumf>, %13, %cst_8 [1] : vector<16x64xf32> to vector<16xf32>
    %15 = vector.shape_cast %14 : vector<16xf32> to vector<16x1xf32>
    %16 = vector.broadcast %15 : vector<16x1xf32> to vector<16x64xf32>
    %17 = arith.subf %13, %16 : vector<16x64xf32>
    %18 = math.exp %17 : vector<16x64xf32>
    %cst_9 = arith.constant dense<0.000000e+00> : vector<16x32xf32>
    %19 = tpu.matmul %18, %10, %cst_9 {dimension_numbers = #tpu.dot_dimension_numbers<[1], [0], [0], [1], [0, 0, 1, 1], [], []>} : vector<16x64xf32>, vector<64x32xf32>, vector<16x32xf32> -> vector<16x32xf32>
    %cst_10 = arith.constant dense<0.000000e+00> : vector<16x32xf32>
    %20 = tpu.matmul %18, %6, %cst_10 {dimension_numbers = #tpu.dot_dimension_numbers<[1], [0], [0], [1], [0, 0, 1, 1], [], []>} : vector<16x64xf32>, vector<64x32xf32>, vector<16x32xf32> -> vector<16x32xf32>
    %cst_11 = arith.constant 1.000000e-30 : f32
    %21 = vector.broadcast %cst_11 : f32 to vector<16x32xf32>
    %22 = arith.maximumf %20, %21 : vector<16x32xf32>
    %23 = tpu.reciprocal %22 {approx = true} : vector<16x32xf32> -> vector<16x32xf32>
    %24 = arith.mulf %19, %23 : vector<16x32xf32>
    %c0_12 = arith.constant 0 : index
    %c0_13 = arith.constant 0 : index
    %25 = vector.load %arg2[%c0_12, %c0_13] : memref<32x32xf32, #tpu.memory_space<vmem>>, vector<32x32xf32>
    %cst_14 = arith.constant dense<0.000000e+00> : vector<16x32xf32>
    %26 = tpu.matmul %24, %25, %cst_14 {dimension_numbers = #tpu.dot_dimension_numbers<[1], [0], [0], [1], [0, 0, 1, 1], [], []>} : vector<16x32xf32>, vector<32x32xf32>, vector<16x32xf32> -> vector<16x32xf32>
    %c0_15 = arith.constant 0 : index
    %c0_16 = arith.constant 0 : index
    %27 = vector.load %arg3[%c0_15, %c0_16] : memref<1x32xf32, #tpu.memory_space<vmem>>, vector<1x32xf32>
    %28 = vector.broadcast %27 : vector<1x32xf32> to vector<16x32xf32>
    %29 = arith.addf %26, %28 : vector<16x32xf32>
    %c0_17 = arith.constant 0 : index
    %c0_18 = arith.constant 0 : index
    %30 = vector.load %arg6[%c0_17, %c0_18] : memref<16x32xf32, #tpu.memory_space<vmem>>, vector<16x32xf32>
    tpu.vector_store %arg6[%c0_17, %c0_18], %29 {strides = array<i32>} : memref<16x32xf32, #tpu.memory_space<vmem>>, vector<16x32xf32>,
    return
  }
}

</mosaic_0001>

<llo_original>
// kernel: multi_head_attention.1
$region0: #{multi_head_attention.1}
  #allocation0 [shape = 'u32[]', space=smem, size = 0x4, offset = 0x4, fixed_abs, tag = 'smem constant byte address 0x4 - core index']
  #allocation1 [shape = 'u32[144,128]{1,0:T(1,128)}', space=vmem, size = 0x12000, scoped, tag = 'internal scratch']
  %s0 = inlined_call_operand.vmem [shape: f32[16,32], index: 0, kind: input, shape index: {}]
  %s1 = inlined_call_operand.vmem [shape: f32[32,96], index: 1, kind: input, shape index: {}]
  %s2 = inlined_call_operand.vmem [shape: f32[32,32], index: 2, kind: input, shape index: {}]
  %s3 = inlined_call_operand.vmem [shape: f32[1,32], index: 3, kind: input, shape index: {}]
  %s4 = inlined_call_operand.vmem [shape: f32[64,32], index: 4, kind: input, shape index: {}]
  %s5 = inlined_call_operand.vmem [shape: f32[16,64], index: 5, kind: input, shape index: {}]
  %s6 = inlined_call_operand.hbm [shape: f32[16,32], index: 6, kind: output, shape index: {}]
  %s7 = sld [smem:[#allocation0]]
  $region34: #{multi_head_attention.1} parent=0
    _
  %s9 = ssub.s32 1, %s7
  %s10 = scalar_select 0, %s9, %s7
  $region1: #{multi_head_attention.1} parent=0
    #allocation2 [shape = 'u8[8192]{0}', space=vmem, size = 0x2000, scoped, tag = 'output window, operand 0, single buffered']
    #allocation3 [shape = 's32[1]{0}', space=sflag, size = 0x4, scoped, tag = 'scoped memory for multi_head_attention.1']
    %11 = vsyncpa [#allocation3], 0
    // Predicated region
    $region2: #{multi_head_attention.1} parent=1 // pred_check
      _
    $region3: #{multi_head_attention.1} parent=1 // pred_check_branch
      %13 = sbr.rel (0) target = $region5
    $region4: #{multi_head_attention.1} parent=1 // pred_region
      _
    $region5: #{multi_head_attention.1} parent=1 // pred_fallthru
      _
    // Predicated region
    $region6: #{multi_head_attention.1} parent=1 // pred_check
      _
    $region7: #{multi_head_attention.1} parent=1 // pred_check_branch
      %15 = sbr.rel (0) target = $region9
    $region8: #{multi_head_attention.1} parent=1 // pred_region
      _
    $region9: #{multi_head_attention.1} parent=1 // pred_fallthru
      _
    // Predicated region
    $region10: #{multi_head_attention.1} parent=1 // pred_check
      _
    $region11: #{multi_head_attention.1} parent=1 // pred_check_branch
      %17 = sbr.rel (0) target = $region13
    $region12: #{multi_head_attention.1} parent=1 // pred_region
      _
    $region13: #{multi_head_attention.1} parent=1 // pred_fallthru
      _
    // Predicated region
    $region14: #{multi_head_attention.1} parent=1 // pred_check
      _
    $region15: #{multi_head_attention.1} parent=1 // pred_check_branch
      %19 = sbr.rel (0) target = $region17
    $region16: #{multi_head_attention.1} parent=1 // pred_region
      _
    $region17: #{multi_head_attention.1} parent=1 // pred_fallthru
      _
    // Predicated region
    $region18: #{multi_head_attention.1} parent=1 // pred_check
      _
    $region19: #{multi_head_attention.1} parent=1 // pred_check_branch
      %21 = sbr.rel (0) target = $region21
    $region20: #{multi_head_attention.1} parent=1 // pred_region
      _
    $region21: #{multi_head_attention.1} parent=1 // pred_fallthru
      _
    // Predicated region
    $region22: #{multi_head_attention.1} parent=1 // pred_check
      _
    $region23: #{multi_head_attention.1} parent=1 // pred_check_branch
      %23 = sbr.rel (0) target = $region25
    $region24: #{multi_head_attention.1} parent=1 // pred_region
      _
    $region25: #{multi_head_attention.1} parent=1 // pred_fallthru
      _
    %v24 = vld [vmem:[%s0] sm:$0xff]
    %v25 = vld [vmem:[%s0 + $0x8] sm:$0xff]
    %v26 = vld [vmem:[%s1] sm:$0xff]
    %v27 = vld [vmem:[%s1 + $0x8] sm:$0xff]
    %v28 = vld [vmem:[%s1 + $0x10] sm:$0xff]
    %v29 = vld [vmem:[%s1 + $0x18] sm:$0xff]
    %vm30 = vcmask 261120
    %v32 = vsel %vm30, %v24, 0
    %v35 = vsel %vm30, %v25, 0
    %37 = vmatprep.subr.mxu0 0.0
    %38 = vmatpush1.msra.mxu0 0.0
    %39 = vmatprep.subr.mxu0 0.0
    %40 = vmatpush1.msra.mxu0 0.0
    %41 = vmatprep.subr.mxu0 0.0
    %42 = vmatpush1.msra.mxu0 0.0
    %43 = vmatprep.subr.mxu0 0.0
    %44 = vmatpush1.msra.mxu0 0.0
    %45 = vmatprep.subr.mxu0 0.0
    %46 = vmatpush1.msra.mxu0 0.0
    %47 = vmatprep.subr.mxu0 0.0
    %48 = vmatpush1.msra.mxu0 0.0
    %49 = vmatprep.subr.mxu0 0.0
    %50 = vmatpush1.msra.mxu0 0.0
    %51 = vmatprep.subr.mxu0 0.0
    %52 = vmatpush1.msra.mxu0 0.0
    %53 = vmatprep.subr.mxu0 0.0
    %54 = vmatpush1.msra.mxu0 0.0
    %55 = vmatprep.subr.mxu0 0.0
    %56 = vmatpush1.msra.mxu0 0.0
    %57 = vmatprep.subr.mxu0 0.0
    %58 = vmatpush1.msra.mxu0 0.0
    %59 = vmatprep.subr.mxu0 0.0
    %60 = vmatpush1.msra.mxu0 0.0
    %61 = vmatprep.subr.mxu0 0.0
    %62 = vmatpush1.msra.mxu0 %v29
    %63 = vmatprep.subr.mxu0 0.0
    %64 = vmatpush1.msra.mxu0 %v28
    %65 = vmatprep.subr.mxu0 0.0
    %66 = vmatpush1.msra.mxu0 %v27
    %67 = vmatprep.subr.mxu0 0.0
    %68 = vmatpush1.msra.mxu0 %v26
    %69 = vmatprep.subr.mxu0 0.0
    %70 = vmatpush2.msra.mxu0 0.0
    %71 = vmatprep.subr.mxu0 0.0
    %72 = vmatpush2.msra.mxu0 0.0
    %73 = vmatprep.subr.mxu0 0.0
    %74 = vmatpush2.msra.mxu0 0.0
    %75 = vmatprep.subr.mxu0 0.0
    %76 = vmatpush2.msra.mxu0 0.0
    %77 = vmatprep.subr.mxu0 0.0
    %78 = vmatpush2.msra.mxu0 0.0
    %79 = vmatprep.subr.mxu0 0.0
    %80 = vmatpush2.msra.mxu0 0.0
    %81 = vmatprep.subr.mxu0 0.0
    %82 = vmatpush2.msra.mxu0 0.0
    %83 = vmatprep.subr.mxu0 0.0
    %84 = vmatpush2.msra.mxu0 0.0
    %85 = vmatprep.subr.mxu0 0.0
    %86 = vmatpush2.msra.mxu0 0.0
    %87 = vmatprep.subr.mxu0 0.0
    %88 = vmatpush2.msra.mxu0 0.0
    %89 = vmatprep.subr.mxu0 0.0
    %90 = vmatpush2.msra.mxu0 0.0
    %91 = vmatprep.subr.mxu0 0.0
    %92 = vmatpush2.msra.mxu0 0.0
    %93 = vmatprep.subr.mxu0 0.0
    %94 = vmatpush2.msra.mxu0 0.0
    %95 = vmatprep.subr.mxu0 0.0
    %96 = vmatpush2.msra.mxu0 0.0
    %97 = vmatprep.subr.mxu0 0.0
    %98 = vmatpush2.msra.mxu0 0.0
    %99 = vmatprep.subr.mxu0 0.0
    %100 = vmatpush2.msra.mxu0 0.0
    %101 = vmatprep.mubr.f32.mxu0 0.0
    %102 = vmatmul.mubr.f32.gmra.mxu0 %v32
    %v103 = vpop.f32.mrf.mxu0
    %v104 = vadd.f32 0.0, %v103
    %v105 = vpop.f32.mrf.mxu0
    %106 = vmatprep.mubr.f32.mxu0 0.0
    %107 = vmatmul.mubr.f32.gmra.mxu0 %v35
    %v108 = vpop.f32.mrf.mxu0
    %v109 = vadd.f32 0.0, %v108
    %v110 = vpop.f32.mrf.mxu0
    %111 = vdwg.mxu0
    %v112 = vld [vmem:[%s4] sm:$0xff]
    %v113 = vld [vmem:[%s4 + $0x8] sm:$0xff]
    %v114 = vld [vmem:[%s4 + $0x10] sm:$0xff]
    %v115 = vld [vmem:[%s4 + $0x18] sm:$0xff]
    %v116 = vld [vmem:[%s4 + $0x20] sm:$0xff]
    %v117 = vld [vmem:[%s4 + $0x28] sm:$0xff]
    %v118 = vld [vmem:[%s4 + $0x30] sm:$0xff]
    %v119 = vld [vmem:[%s4 + $0x38] sm:$0xff]
    %128 = vrot.lane.b32.xlu0 %v112, 32
    %v129 = vpop.permute.xlu0 %128
    %130 = vrot.lane.b32.xlu0 %v113, 32
    %v131 = vpop.permute.xlu0 %130
    %132 = vrot.lane.b32.xlu0 %v114, 32
    %v133 = vpop.permute.xlu0 %132
    %134 = vrot.lane.b32.xlu0 %v115, 32
    %v135 = vpop.permute.xlu0 %134
    %136 = vrot.lane.b32.xlu0 %v116, 32
    %v137 = vpop.permute.xlu0 %136
    %138 = vrot.lane.b32.xlu0 %v117, 32
    %v139 = vpop.permute.xlu0 %138
    %140 = vrot.lane.b32.xlu0 %v118, 32
    %v141 = vpop.permute.xlu0 %140
    %142 = vrot.lane.b32.xlu0 %v119, 32
    %v143 = vpop.permute.xlu0 %142
    %v152 = vmul.f32 %v104, %v129
    %v153 = vmul.f32 %v109, %v131
    %v154 = vmul.f32 %v104, %v133
    %v155 = vmul.f32 %v109, %v135
    %v156 = vmul.f32 %v104, %v137
    %v157 = vmul.f32 %v109, %v139
    %v158 = vmul.f32 %v104, %v141
    %v159 = vmul.f32 %v109, %v143
    %160 = vrot.lane.b32.xlu0 %v112, 64
    %v161 = vpop.permute.xlu0 %160
    %162 = vrot.lane.b32.xlu0 %v113, 64
    %v163 = vpop.permute.xlu0 %162
    %164 = vrot.lane.b32.xlu0 %v114, 64
    %v165 = vpop.permute.xlu0 %164
    %166 = vrot.lane.b32.xlu0 %v115, 64
    %v167 = vpop.permute.xlu0 %166
    %168 = vrot.lane.b32.xlu0 %v116, 64
    %v169 = vpop.permute.xlu0 %168
    %170 = vrot.lane.b32.xlu0 %v117, 64
    %v171 = vpop.permute.xlu0 %170
    %172 = vrot.lane.b32.xlu0 %v118, 64
    %v173 = vpop.permute.xlu0 %172
    %174 = vrot.lane.b32.xlu0 %v119, 64
    %v175 = vpop.permute.xlu0 %174
    %v184 = vmul.f32 %v104, %v161
    %v185 = vmul.f32 %v109, %v163
    %v186 = vmul.f32 %v104, %v165
    %v187 = vmul.f32 %v109, %v167
    %v188 = vmul.f32 %v104, %v169
    %v189 = vmul.f32 %v109, %v171
    %v190 = vmul.f32 %v104, %v173
    %v191 = vmul.f32 %v109, %v175
    %v192 = vld [vmem:[%s5] sm:$0xff]
    %v193 = vld [vmem:[%s5 + $0x8] sm:$0xff]
    %202 = vrot.lane.b32.xlu0 %v152, 96
    %v203 = vpop.permute.xlu0 %202
    %204 = vrot.lane.b32.xlu0 %v153, 96
    %v205 = vpop.permute.xlu0 %204
    %206 = vrot.lane.b32.xlu0 %v154, 96
    %v207 = vpop.permute.xlu0 %206
    %208 = vrot.lane.b32.xlu0 %v155, 96
    %v209 = vpop.permute.xlu0 %208
    %210 = vrot.lane.b32.xlu0 %v156, 96
    %v211 = vpop.permute.xlu0 %210
    %212 = vrot.lane.b32.xlu0 %v157, 96
    %v213 = vpop.permute.xlu0 %212
    %214 = vrot.lane.b32.xlu0 %v158, 96
    %v215 = vpop.permute.xlu0 %214
    %216 = vrot.lane.b32.xlu0 %v159, 96
    %v217 = vpop.permute.xlu0 %216
    %v219 = vsel %vm30, %v104, 0
    %v222 = vsel %vm30, %v109, 0
    %v224 = vsel %vm30, %v203, 0
    %v226 = vsel %vm30, %v205, 0
    %v228 = vsel %vm30, %v207, 0
    %v230 = vsel %vm30, %v209, 0
    %v232 = vsel %vm30, %v211, 0
    %v234 = vsel %vm30, %v213, 0
    %v236 = vsel %vm30, %v215, 0
    %v238 = vsel %vm30, %v217, 0
    %240 = vmatprep.subr.mxu0 0.0
    %241 = vmatpush1.xpose.msra.mxu0 0.0
    %242 = vmatprep.subr.mxu0 0.0
    %243 = vmatpush1.xpose.msra.mxu0 0.0
    %244 = vmatprep.subr.mxu0 0.0
    %245 = vmatpush1.xpose.msra.mxu0 0.0
    %246 = vmatprep.subr.mxu0 0.0
    %247 = vmatpush1.xpose.msra.mxu0 0.0
    %248 = vmatprep.subr.mxu0 0.0
    %249 = vmatpush1.xpose.msra.mxu0 0.0
    %250 = vmatprep.subr.mxu0 0.0
    %251 = vmatpush1.xpose.msra.mxu0 0.0
    %252 = vmatprep.subr.mxu0 0.0
    %253 = vmatpush1.xpose.msra.mxu0 0.0
    %254 = vmatprep.subr.mxu0 0.0
    %255 = vmatpush1.xpose.msra.mxu0 0.0
    %256 = vmatprep.subr.mxu0 0.0
    %257 = vmatpush1.xpose.msra.mxu0 %v238
    %258 = vmatprep.subr.mxu0 0.0
    %259 = vmatpush1.xpose.msra.mxu0 %v236
    %260 = vmatprep.subr.mxu0 0.0
    %261 = vmatpush1.xpose.msra.mxu0 %v234
    %262 = vmatprep.subr.mxu0 0.0
    %263 = vmatpush1.xpose.msra.mxu0 %v232
    %264 = vmatprep.subr.mxu0 0.0
    %265 = vmatpush1.xpose.msra.mxu0 %v230
    %266 = vmatprep.subr.mxu0 0.0
    %267 = vmatpush1.xpose.msra.mxu0 %v228
    %268 = vmatprep.subr.mxu0 0.0
    %269 = vmatpush1.xpose.msra.mxu0 %v226
    %270 = vmatprep.subr.mxu0 0.0
    %271 = vmatpush1.xpose.msra.mxu0 %v224
    %272 = vmatprep.subr.mxu0 0.0
    %273 = vmatpush2.xpose.msra.mxu0 0.0
    %274 = vmatprep.subr.mxu0 0.0
    %275 = vmatpush2.xpose.msra.mxu0 0.0
    %276 = vmatprep.subr.mxu0 0.0
    %277 = vmatpush2.xpose.msra.mxu0 0.0
    %278 = vmatprep.subr.mxu0 0.0
    %279 = vmatpush2.xpose.msra.mxu0 0.0
    %280 = vmatprep.subr.mxu0 0.0
    %281 = vmatpush2.xpose.msra.mxu0 0.0
    %282 = vmatprep.subr.mxu0 0.0
    %283 = vmatpush2.xpose.msra.mxu0 0.0
    %284 = vmatprep.subr.mxu0 0.0
    %285 = vmatpush2.xpose.msra.mxu0 0.0
    %286 = vmatprep.subr.mxu0 0.0
    %287 = vmatpush2.xpose.msra.mxu0 0.0
    %288 = vmatprep.subr.mxu0 0.0
    %289 = vmatpush2.xpose.msra.mxu0 0.0
    %290 = vmatprep.subr.mxu0 0.0
    %291 = vmatpush2.xpose.msra.mxu0 0.0
    %292 = vmatprep.subr.mxu0 0.0
    %293 = vmatpush2.xpose.msra.mxu0 0.0
    %294 = vmatprep.subr.mxu0 0.0
    %295 = vmatpush2.xpose.msra.mxu0 0.0
    %296 = vmatprep.subr.mxu0 0.0
    %297 = vmatpush2.xpose.msra.mxu0 0.0
    %298 = vmatprep.subr.mxu0 0.0
    %299 = vmatpush2.xpose.msra.mxu0 0.0
    %300 = vmatprep.subr.mxu0 0.0
    %301 = vmatpush2.xpose.msra.mxu0 0.0
    %302 = vmatprep.subr.mxu0 0.0
    %303 = vmatpush2.xpose.msra.mxu0 0.0
    %304 = vmatprep.mubr.f32.mxu0 0.0
    %305 = vmatmul.mubr.f32.gmra.mxu0 %v219
    %v306 = vpop.f32.mrf.mxu0
    %v307 = vadd.f32 %v192, %v306
    %v308 = vpop.f32.mrf.mxu0
    %309 = vmatprep.mubr.f32.mxu0 0.0
    %310 = vmatmul.mubr.f32.gmra.mxu0 %v222
    %v311 = vpop.f32.mrf.mxu0
    %v312 = vadd.f32 %v193, %v311
    %v313 = vpop.f32.mrf.mxu0
    %314 = vdwg.mxu0
    %vm315 = vcmask 523264
    %v316 = vsel %vm315, %v307, -inf
    %317 = vmax.xlane.f32.xlu0 %v316
    %v318 = vpop.xlane.xlu0 %317
    %v319 = vsel %vm315, %v312, -inf
    %320 = vmax.xlane.f32.xlu0 %v319
    %v321 = vpop.xlane.xlu0 %320
    %v322 = vsub.f32 %v307, %v318
    %v323 = vsub.f32 %v312, %v321
    %v324 = vmul.f32 %v322, 1.442695
    %v325 = vpow.pop %v324
    %v326 = vmul.f32 %v323, 1.442695
    %v327 = vpow.pop %v326
    %336 = vrot.lane.b32.xlu0 %v184, 64
    %v337 = vpop.permute.xlu0 %336
    %338 = vrot.lane.b32.xlu0 %v185, 64
    %v339 = vpop.permute.xlu0 %338
    %340 = vrot.lane.b32.xlu0 %v186, 64
    %v341 = vpop.permute.xlu0 %340
    %342 = vrot.lane.b32.xlu0 %v187, 64
    %v343 = vpop.permute.xlu0 %342
    %344 = vrot.lane.b32.xlu0 %v188, 64
    %v345 = vpop.permute.xlu0 %344
    %346 = vrot.lane.b32.xlu0 %v189, 64
    %v347 = vpop.permute.xlu0 %346
    %348 = vrot.lane.b32.xlu0 %v190, 64
    %v349 = vpop.permute.xlu0 %348
    %350 = vrot.lane.b32.xlu0 %v191, 64
    %v351 = vpop.permute.xlu0 %350
    %v361 = vsel %vm315, %v325, 0
    %v364 = vsel %vm315, %v327, 0
    %366 = vmatprep.subr.mxu0 0.0
    %367 = vmatpush1.msra.mxu0 0.0
    %368 = vmatprep.subr.mxu0 0.0
    %369 = vmatpush1.msra.mxu0 0.0
    %370 = vmatprep.subr.mxu0 0.0
    %371 = vmatpush1.msra.mxu0 0.0
    %372 = vmatprep.subr.mxu0 0.0
    %373 = vmatpush1.msra.mxu0 0.0
    %374 = vmatprep.subr.mxu0 0.0
    %375 = vmatpush1.msra.mxu0 0.0
    %376 = vmatprep.subr.mxu0 0.0
    %377 = vmatpush1.msra.mxu0 0.0
    %378 = vmatprep.subr.mxu0 0.0
    %379 = vmatpush1.msra.mxu0 0.0
    %380 = vmatprep.subr.mxu0 0.0
    %381 = vmatpush1.msra.mxu0 0.0
    %382 = vmatprep.subr.mxu0 0.0
    %383 = vmatpush1.msra.mxu0 %v351
    %384 = vmatprep.subr.mxu0 0.0
    %385 = vmatpush1.msra.mxu0 %v349
    %386 = vmatprep.subr.mxu0 0.0
    %387 = vmatpush1.msra.mxu0 %v347
    %388 = vmatprep.subr.mxu0 0.0
    %389 = vmatpush1.msra.mxu0 %v345
    %390 = vmatprep.subr.mxu0 0.0
    %391 = vmatpush1.msra.mxu0 %v343
    %392 = vmatprep.subr.mxu0 0.0
    %393 = vmatpush1.msra.mxu0 %v341
    %394 = vmatprep.subr.mxu0 0.0
    %395 = vmatpush1.msra.mxu0 %v339
    %396 = vmatprep.subr.mxu0 0.0
    %397 = vmatpush1.msra.mxu0 %v337
    %398 = vmatprep.subr.mxu0 0.0
    %399 = vmatpush2.msra.mxu0 0.0
    %400 = vmatprep.subr.mxu0 0.0
    %401 = vmatpush2.msra.mxu0 0.0
    %402 = vmatprep.subr.mxu0 0.0
    %403 = vmatpush2.msra.mxu0 0.0
    %404 = vmatprep.subr.mxu0 0.0
    %405 = vmatpush2.msra.mxu0 0.0
    %406 = vmatprep.subr.mxu0 0.0
    %407 = vmatpush2.msra.mxu0 0.0
    %408 = vmatprep.subr.mxu0 0.0
    %409 = vmatpush2.msra.mxu0 0.0
    %410 = vmatprep.subr.mxu0 0.0
    %411 = vmatpush2.msra.mxu0 0.0
    %412 = vmatprep.subr.mxu0 0.0
    %413 = vmatpush2.msra.mxu0 0.0
    %414 = vmatprep.subr.mxu0 0.0
    %415 = vmatpush2.msra.mxu0 0.0
    %416 = vmatprep.subr.mxu0 0.0
    %417 = vmatpush2.msra.mxu0 0.0
    %418 = vmatprep.subr.mxu0 0.0
    %419 = vmatpush2.msra.mxu0 0.0
    %420 = vmatprep.subr.mxu0 0.0
    %421 = vmatpush2.msra.mxu0 0.0
    %422 = vmatprep.subr.mxu0 0.0
    %423 = vmatpush2.msra.mxu0 0.0
    %424 = vmatprep.subr.mxu0 0.0
    %425 = vmatpush2.msra.mxu0 0.0
    %426 = vmatprep.subr.mxu0 0.0
    %427 = vmatpush2.msra.mxu0 0.0
    %428 = vmatprep.subr.mxu0 0.0
    %429 = vmatpush2.msra.mxu0 0.0
    %430 = vmatprep.mubr.f32.mxu0 0.0
    %431 = vmatmul.mubr.f32.gmra.mxu0 %v361
    %v432 = vpop.f32.mrf.mxu0
    %v433 = vadd.f32 0.0, %v432
    %v434 = vpop.f32.mrf.mxu0
    %435 = vmatprep.mubr.f32.mxu0 0.0
    %436 = vmatmul.mubr.f32.gmra.mxu0 %v364
    %v437 = vpop.f32.mrf.mxu0
    %v438 = vadd.f32 0.0, %v437
    %v439 = vpop.f32.mrf.mxu0
    %440 = vdwg.mxu0
    %441 = vmatprep.subr.mxu0 0.0
    %442 = vmatpush1.msra.mxu0 0.0
    %443 = vmatprep.subr.mxu0 0.0
    %444 = vmatpush1.msra.mxu0 0.0
    %445 = vmatprep.subr.mxu0 0.0
    %446 = vmatpush1.msra.mxu0 0.0
    %447 = vmatprep.subr.mxu0 0.0
    %448 = vmatpush1.msra.mxu0 0.0
    %449 = vmatprep.subr.mxu0 0.0
    %450 = vmatpush1.msra.mxu0 0.0
    %451 = vmatprep.subr.mxu0 0.0
    %452 = vmatpush1.msra.mxu0 0.0
    %453 = vmatprep.subr.mxu0 0.0
    %454 = vmatpush1.msra.mxu0 0.0
    %455 = vmatprep.subr.mxu0 0.0
    %456 = vmatpush1.msra.mxu0 0.0
    %457 = vmatprep.subr.mxu0 0.0
    %458 = vmatpush1.msra.mxu0 %v119
    %459 = vmatprep.subr.mxu0 0.0
    %460 = vmatpush1.msra.mxu0 %v118
    %461 = vmatprep.subr.mxu0 0.0
    %462 = vmatpush1.msra.mxu0 %v117
    %463 = vmatprep.subr.mxu0 0.0
    %464 = vmatpush1.msra.mxu0 %v116
    %465 = vmatprep.subr.mxu0 0.0
    %466 = vmatpush1.msra.mxu0 %v115
    %467 = vmatprep.subr.mxu0 0.0
    %468 = vmatpush1.msra.mxu0 %v114
    %469 = vmatprep.subr.mxu0 0.0
    %470 = vmatpush1.msra.mxu0 %v113
    %471 = vmatprep.subr.mxu0 0.0
    %472 = vmatpush1.msra.mxu0 %v112
    %473 = vmatprep.subr.mxu0 0.0
    %474 = vmatpush2.msra.mxu0 0.0
    %475 = vmatprep.subr.mxu0 0.0
    %476 = vmatpush2.msra.mxu0 0.0
    %477 = vmatprep.subr.mxu0 0.0
    %478 = vmatpush2.msra.mxu0 0.0
    %479 = vmatprep.subr.mxu0 0.0
    %480 = vmatpush2.msra.mxu0 0.0
    %481 = vmatprep.subr.mxu0 0.0
    %482 = vmatpush2.msra.mxu0 0.0
    %483 = vmatprep.subr.mxu0 0.0
    %484 = vmatpush2.msra.mxu0 0.0
    %485 = vmatprep.subr.mxu0 0.0
    %486 = vmatpush2.msra.mxu0 0.0
    %487 = vmatprep.subr.mxu0 0.0
    %488 = vmatpush2.msra.mxu0 0.0
    %489 = vmatprep.subr.mxu0 0.0
    %490 = vmatpush2.msra.mxu0 0.0
    %491 = vmatprep.subr.mxu0 0.0
    %492 = vmatpush2.msra.mxu0 0.0
    %493 = vmatprep.subr.mxu0 0.0
    %494 = vmatpush2.msra.mxu0 0.0
    %495 = vmatprep.subr.mxu0 0.0
    %496 = vmatpush2.msra.mxu0 0.0
    %497 = vmatprep.subr.mxu0 0.0
    %498 = vmatpush2.msra.mxu0 0.0
    %499 = vmatprep.subr.mxu0 0.0
    %500 = vmatpush2.msra.mxu0 0.0
    %501 = vmatprep.subr.mxu0 0.0
    %502 = vmatpush2.msra.mxu0 0.0
    %503 = vmatprep.subr.mxu0 0.0
    %504 = vmatpush2.msra.mxu0 0.0
    %505 = vmatprep.mubr.f32.mxu0 0.0
    %506 = vmatmul.mubr.f32.gmra.mxu0 %v361
    %v507 = vpop.f32.mrf.mxu0
    %v508 = vadd.f32 0.0, %v507
    %v509 = vpop.f32.mrf.mxu0
    %510 = vmatprep.mubr.f32.mxu0 0.0
    %511 = vmatmul.mubr.f32.gmra.mxu0 %v364
    %v512 = vpop.f32.mrf.mxu0
    %v513 = vadd.f32 0.0, %v512
    %v514 = vpop.f32.mrf.mxu0
    %515 = vdwg.mxu0
    %v516 = vmax.f32 %v508, 1e-30
    %v517 = vmax.f32 %v513, 1e-30
    %v518 = vrcp.pop %v516
    %v519 = vrcp.pop %v517
    %v520 = vmul.f32 %v433, %v518
    %v521 = vmul.f32 %v438, %v519
    %v522 = vld [vmem:[%s2] sm:$0xff]
    %v523 = vld [vmem:[%s2 + $0x8] sm:$0xff]
    %v524 = vld [vmem:[%s2 + $0x10] sm:$0xff]
    %v525 = vld [vmem:[%s2 + $0x18] sm:$0xff]
    %v526 = vld [vmem:[%s3] sm:$0x1]
    %v528 = vlaneseq
    %v529 = vshrl.u32 %v528, 7
    %v530 = vsub.s32 0, %v529
    %v531 = vrot.slane %v526, %v530
    %v534 = vsel %vm30, %v520, 0
    %v537 = vsel %vm30, %v521, 0
    %539 = vmatprep.subr.mxu0 0.0
    %540 = vmatpush1.msra.mxu0 0.0
    %541 = vmatprep.subr.mxu0 0.0
    %542 = vmatpush1.msra.mxu0 0.0
    %543 = vmatprep.subr.mxu0 0.0
    %544 = vmatpush1.msra.mxu0 0.0
    %545 = vmatprep.subr.mxu0 0.0
    %546 = vmatpush1.msra.mxu0 0.0
    %547 = vmatprep.subr.mxu0 0.0
    %548 = vmatpush1.msra.mxu0 0.0
    %549 = vmatprep.subr.mxu0 0.0
    %550 = vmatpush1.msra.mxu0 0.0
    %551 = vmatprep.subr.mxu0 0.0
    %552 = vmatpush1.msra.mxu0 0.0
    %553 = vmatprep.subr.mxu0 0.0
    %554 = vmatpush1.msra.mxu0 0.0
    %555 = vmatprep.subr.mxu0 0.0
    %556 = vmatpush1.msra.mxu0 0.0
    %557 = vmatprep.subr.mxu0 0.0
    %558 = vmatpush1.msra.mxu0 0.0
    %559 = vmatprep.subr.mxu0 0.0
    %560 = vmatpush1.msra.mxu0 0.0
    %561 = vmatprep.subr.mxu0 0.0
    %562 = vmatpush1.msra.mxu0 0.0
    %563 = vmatprep.subr.mxu0 0.0
    %564 = vmatpush1.msra.mxu0 %v525
    %565 = vmatprep.subr.mxu0 0.0
    %566 = vmatpush1.msra.mxu0 %v524
    %567 = vmatprep.subr.mxu0 0.0
    %568 = vmatpush1.msra.mxu0 %v523
    %569 = vmatprep.subr.mxu0 0.0
    %570 = vmatpush1.msra.mxu0 %v522
    %571 = vmatprep.subr.mxu0 0.0
    %572 = vmatpush2.msra.mxu0 0.0
    %573 = vmatprep.subr.mxu0 0.0
    %574 = vmatpush2.msra.mxu0 0.0
    %575 = vmatprep.subr.mxu0 0.0
    %576 = vmatpush2.msra.mxu0 0.0
    %577 = vmatprep.subr.mxu0 0.0
    %578 = vmatpush2.msra.mxu0 0.0
    %579 = vmatprep.subr.mxu0 0.0
    %580 = vmatpush2.msra.mxu0 0.0
    %581 = vmatprep.subr.mxu0 0.0
    %582 = vmatpush2.msra.mxu0 0.0
    %583 = vmatprep.subr.mxu0 0.0
    %584 = vmatpush2.msra.mxu0 0.0
    %585 = vmatprep.subr.mxu0 0.0
    %586 = vmatpush2.msra.mxu0 0.0
    %587 = vmatprep.subr.mxu0 0.0
    %588 = vmatpush2.msra.mxu0 0.0
    %589 = vmatprep.subr.mxu0 0.0
    %590 = vmatpush2.msra.mxu0 0.0
    %591 = vmatprep.subr.mxu0 0.0
    %592 = vmatpush2.msra.mxu0 0.0
    %593 = vmatprep.subr.mxu0 0.0
    %594 = vmatpush2.msra.mxu0 0.0
    %595 = vmatprep.subr.mxu0 0.0
    %596 = vmatpush2.msra.mxu0 0.0
    %597 = vmatprep.subr.mxu0 0.0
    %598 = vmatpush2.msra.mxu0 0.0
    %599 = vmatprep.subr.mxu0 0.0
    %600 = vmatpush2.msra.mxu0 0.0
    %601 = vmatprep.subr.mxu0 0.0
    %602 = vmatpush2.msra.mxu0 0.0
    %603 = vmatprep.mubr.f32.mxu0 0.0
    %604 = vmatmul.mubr.f32.gmra.mxu0 %v534
    %v605 = vpop.f32.mrf.mxu0
    %v606 = vadd.f32 %v531, %v605
    %v607 = vpop.f32.mrf.mxu0
    %608 = vmatprep.mubr.f32.mxu0 0.0
    %609 = vmatmul.mubr.f32.gmra.mxu0 %v537
    %v610 = vpop.f32.mrf.mxu0
    %v611 = vadd.f32 %v531, %v610
    %v612 = vpop.f32.mrf.mxu0
    %613 = vdwg.mxu0
    %614 = vst.msk [vmem:[#allocation2] sm:$0xff] %vm30, %v606
    %615 = vst.msk [vmem:[#allocation2 + $0x8] sm:$0xff] %vm30, %v611
    // Predicated region
    $region26: #{multi_head_attention.1} parent=1 // pred_check
      _
    $region27: #{multi_head_attention.1} parent=1 // pred_check_branch
      %617 = sbr.rel (0) target = $region29
    $region28: #{multi_head_attention.1} parent=1 // pred_region
      %s619 = ssub.s32 256, 256
      %620 = vsyncadd [#allocation3], %s619
      %s621 = sshll.u32 [#allocation2], 4
      %s622 = int_to_ptr.vmem [resolvable:$true] %s621
      %627 = dma.vmem_to_hbm [thread:$0]  %s622, 256, %s6, [#allocation3], 128, 128, 8
    $region29: #{multi_head_attention.1} parent=1 // pred_fallthru
      _
    // Predicated region
    $region30: #{multi_head_attention.1} parent=1 // pred_check
      _
    $region31: #{multi_head_attention.1} parent=1 // pred_check_branch
      %629 = sbr.rel (0) target = $region33
    $region32: #{multi_head_attention.1} parent=1 // pred_region
      %630 = dma.done [#allocation3], 256
    $region33: #{multi_head_attention.1} parent=1 // pred_fallthru
      _
    %631 = vsyncpa [#allocation3], 1

</llo_original>
